<compile_context>
chip_gen: v7x
topology: tpu7x:2x2x1
jax: 0.10.0
libtpu: 0.0.40
codegen_flags: <defaults>
</compile_context>

<pallas_src>
import functools

import jax
import jax.numpy as jnp
from jax.experimental import pallas as pl
from jax.experimental.pallas import tpu as pltpu

MARGIN = 0.0
EPS = 1e-8

_TB_CAP = 8192                           # rows per block (upper bound)
_INPUT_BUDGET_CAP = 32 * 1024 * 1024     # bytes for 2 inputs x 2 pipeline bufs


def _vmem_capacity_bytes():
    """Physical VMEM of the local TPU; conservative fallback if unknown."""
    try:
        info = pltpu.get_tpu_info()
        for attr in ("vmem_capacity_bytes", "vmem_bytes", "vmem_size_bytes"):
            v = getattr(info, attr, None)
            if v is None:
                continue
            try:
                v = int(v)
            except Exception:
                continue
            if v > 0:
                return v
    except Exception:
        pass
    return 64 * 1024 * 1024              # v7x per-TC VMEM (smallest current)


def _num_tensorcores():
    """Best-effort TensorCore count (v7x has 2); falls back to 1."""
    try:
        info = pltpu.get_tpu_info()
    except Exception:
        return 1
    for attr in ("num_cores", "core_count", "num_tensorcores",
                 "tensorcore_count", "cores_per_chip", "num_cores_per_chip"):
        v = getattr(info, attr, None)
        if v is None:
            continue
        try:
            v = int(v)
        except Exception:
            continue
        if 1 <= v <= 8:
            return v
    return 1


def _choose_tb(n_rows, d, itemsize, input_budget, align):
    per_row = 2 * 2 * d * itemsize        # 2 inputs x 2 pipeline buffers
    tb = (input_budget // per_row) // align * align
    tb = max(align, min(tb, _TB_CAP))
    if n_rows <= tb:
        return n_rows                     # single full-extent block: always legal
    return tb


def _zero_cosine_loss_kernel(x1_ref, x2_ref, out_ref, *, margin, n_rows, tb,
                             blocks_per_shard, mask_from_block, need_mask):
    s = pl.program_id(0)   # shard (TensorCore) axis -- "parallel"
    j = pl.program_id(1)   # block within shard      -- "arbitrary" reduction

    @pl.when(j == 0)
    def _():
        out_ref[...] = jnp.zeros_like(out_ref)

    x1 = x1_ref[...].astype(jnp.float32)
    x2 = x2_ref[...].astype(jnp.float32)

    # Per-row reductions over the feature (lane) axis.
    dot = jnp.sum(x1 * x2, axis=1, keepdims=True)
    n1sq = jnp.sum(x1 * x1, axis=1, keepdims=True)
    n2sq = jnp.sum(x2 * x2, axis=1, keepdims=True)

    # torch eps semantics: dot / (max(||x1||,eps) * max(||x2||,eps))
    #   == dot * rsqrt(max(n1sq,eps^2) * max(n2sq,eps^2))   (single EUP rsqrt)
    inv_norm = jax.lax.rsqrt(
        jnp.maximum(n1sq, EPS * EPS) * jnp.maximum(n2sq, EPS * EPS))
    sim_abs = jnp.abs(dot * inv_norm)

    if margin == 0.0:
        # |sim| >= 0 already, so only the upper clamp survives.
        loss = jnp.minimum(sim_abs, 1.0)
    else:
        loss = jnp.clip(sim_abs - margin, 0.0, 1.0)

    partial = jnp.sum(loss)

    if not need_mask:
        # Every block is full: no tail masking anywhere (static skip).
        out_ref[...] += partial
    else:
        blk = s * blocks_per_shard + j    # logical (unclamped) global block

        @pl.when(blk < mask_from_block)
        def _():
            out_ref[...] += partial

        @pl.when(blk >= mask_from_block)
        def _():
            # Tail block (N % tb rows) and/or padded blocks past the end of
            # the array (the input index_map clamps those to the last valid
            # block, so masking by logical row index zeroes them entirely).
            row = blk * tb + jax.lax.broadcasted_iota(jnp.int32, loss.shape, 0)
            out_ref[...] += jnp.sum(jnp.where(row < n_rows, loss, 0.0))


def zero_cosine_loss(x1, x2, *, margin=MARGIN, tb=None, n_shards=None):
    assert x1.shape == x2.shape and x1.ndim == 2
    assert x1.dtype == x2.dtype
    N, D = x1.shape
    itemsize = jnp.dtype(x1.dtype).itemsize
    align = 8 * max(1, 4 // itemsize)     # sublane alignment: 8 f32 / 16 bf16

    vmem_cap = _vmem_capacity_bytes()
    input_budget = min(_INPUT_BUDGET_CAP, vmem_cap // 2)

    if tb is None:
        tb = _choose_tb(N, D, itemsize, input_budget, align)
    elif tb >= N:
        tb = N
    else:
        tb = ((int(tb) + align - 1) // align) * align
        if tb >= N:
            tb = N

    num_valid_blocks = pl.cdiv(N, tb)

    if n_shards is None:
        n_shards = _num_tensorcores()
    n_shards = max(1, min(int(n_shards), num_valid_blocks))
    blocks_per_shard = pl.cdiv(num_valid_blocks, n_shards)
    total_blocks = n_shards * blocks_per_shard
    padded = total_blocks > num_valid_blocks

    tail = (N % tb) != 0
    mask_from_block = num_valid_blocks - 1 if tail else num_valid_blocks
    need_mask = total_blocks > mask_from_block

    # Scoped-VMEM limit derived from the actual tile footprint + headroom.
    footprint = 2 * 2 * tb * D * itemsize          # 2 inputs x double buffer
    vmem_limit = max(footprint + (6 << 20), 16 << 20)
    vmem_limit = min(vmem_limit, (vmem_cap * 3) // 4)
    vmem_limit = max(vmem_limit, footprint + (2 << 20))

    if padded:
        last_blk = num_valid_blocks - 1

        def in_index_map(s, j):
            return (jnp.minimum(s * blocks_per_shard + j, last_blk), 0)
    else:
        def in_index_map(s, j):
            return (s * blocks_per_shard + j, 0)

    kernel = functools.partial(
        _zero_cosine_loss_kernel,
        margin=float(margin),
        n_rows=N,
        tb=tb,
        blocks_per_shard=blocks_per_shard,
        mask_from_block=mask_from_block,
        need_mask=need_mask,
    )

    out = pl.pallas_call(
        kernel,
        out_shape=jax.ShapeDtypeStruct((n_shards, 8, 128), jnp.float32),
        grid_spec=pltpu.PrefetchScalarGridSpec(
            num_scalar_prefetch=0,
            grid=(n_shards, blocks_per_shard),
            in_specs=[
                pl.BlockSpec((tb, D), in_index_map),
                pl.BlockSpec((tb, D), in_index_map),
            ],
            out_specs=pl.BlockSpec((1, 8, 128), lambda s, j: (s, 0, 0)),
        ),
        compiler_params=pltpu.CompilerParams(
            dimension_semantics=("parallel", "arbitrary"),
            vmem_limit_bytes=int(vmem_limit),
        ),
    )(x1, x2)

    # Every element of a shard's (8,128) block holds that shard's partial sum.
    return jnp.sum(out[:, 0, 0]) / jnp.float32(N)


def zero_cosine_loss_ref(x1, x2, margin=MARGIN):
    x1 = x1.astype(jnp.float32)
    x2 = x2.astype(jnp.float32)
    dot = jnp.sum(x1 * x2, axis=1)
    n1 = jnp.maximum(jnp.linalg.norm(x1, axis=1), EPS)
    n2 = jnp.maximum(jnp.linalg.norm(x2, axis=1), EPS)
    sim = dot / (n1 * n2)
    return jnp.mean(jnp.clip(jnp.abs(sim) - margin, 0.0, 1.0))


if __name__ == "__main__":
    key = jax.random.PRNGKey(0)
    k1, k2, k3, k4, k5, k6 = jax.random.split(key, 6)

    # Case 1: small aligned batch, f32, single full-extent block.
    N, D = 16, 128
    x1 = jax.random.normal(k1, (N, D), dtype=jnp.float32)
    x2 = jax.random.normal(k2, (N, D), dtype=jnp.float32)
    out = zero_cosine_loss(x1, x2)
    jax.block_until_ready(out)
    ref = zero_cosine_loss_ref(x1, x2)
    assert jnp.allclose(out, ref, atol=1e-5, rtol=1e-5), (out, ref)

    # Case 1b: nonzero margin (exercises the general clip path).
    out_m = zero_cosine_loss(x1, x2, margin=0.3)
    jax.block_until_ready(out_m)
    ref_m = zero_cosine_loss_ref(x1, x2, margin=0.3)
    assert jnp.allclose(out_m, ref_m, atol=1e-5, rtol=1e-5), (out_m, ref_m)

    # Case 2: non-divisible batch, small forced tile, 2 shards (exercises
    # multi-block accumulation, tail-row masking and per-shard partials).
    N2, D2 = 13, 128
    y1 = jax.random.normal(k3, (N2, D2), dtype=jnp.float32)
    y2 = jax.random.normal(k4, (N2, D2), dtype=jnp.float32)
    out2 = zero_cosine_loss(y1, y2, tb=8, n_shards=2)
    jax.block_until_ready(out2)
    ref2 = zero_cosine_loss_ref(y1, y2)
    assert jnp.allclose(out2, ref2, atol=1e-5, rtol=1e-5), (out2, ref2)

    # Case 3: bf16 inputs with a shard count that does not divide the block
    # count (exercises the clamped padded-block path).
    N3, D3 = 48, 256
    z1 = jax.random.normal(k5, (N3, D3), dtype=jnp.bfloat16)
    z2 = jax.random.normal(k6, (N3, D3), dtype=jnp.bfloat16)
    out3 = zero_cosine_loss(z1, z2, tb=16, n_shards=2)
    jax.block_until_ready(out3)
    ref3 = zero_cosine_loss_ref(z1, z2)
    assert jnp.allclose(out3, ref3, atol=1e-5, rtol=1e-5), (out3, ref3)

    print("KERNEL_OK")
</pallas_src>

<mosaic_0001>
module attributes {stable_mosaic.version = 11 : i64} {
  func.func @_zero_cosine_loss_kernel(%arg0: i32, %arg1: i32, %arg2: memref<16x128xf32, #tpu.memory_space<vmem>>, %arg3: memref<16x128xf32, #tpu.memory_space<vmem>>, %arg4: memref<1x8x128xf32, #tpu.memory_space<vmem>>) attributes {dimension_semantics = [#tpu.dimension_semantics<parallel>, #tpu.dimension_semantics<arbitrary>], iteration_bounds = array<i64: 1, 1>, scalar_prefetch = 0 : i64, scratch_operands = 0 : i64, tpu.core_type = #tpu.core_type<tc>, window_params = [{transform_indices = @transform_0, window_bounds = array<i64: 16, 128>}, {transform_indices = @transform_1, window_bounds = array<i64: 16, 128>}, {transform_indices = @transform_2, window_bounds = array<i64: 1, 8, 128>}]} {
    %c0_i32 = arith.constant 0 : i32
    %0 = arith.cmpi eq, %arg1, %c0_i32 : i32
    %1 = arith.extui %0 : i1 to i32
    %c0_i32_0 = arith.constant 0 : i32
    %2 = arith.cmpi ne, %1, %c0_i32_0 : i32
    scf.if %2 {
      %cst_16 = arith.constant 0.000000e+00 : f32
      %32 = vector.broadcast %cst_16 : f32 to vector<1x8x128xf32>
      %c0_17 = arith.constant 0 : index
      %c0_18 = arith.constant 0 : index
      %c0_19 = arith.constant 0 : index
      %33 = vector.load %arg4[%c0_17, %c0_18, %c0_19] : memref<1x8x128xf32, #tpu.memory_space<vmem>>, vector<1x8x128xf32>
      tpu.vector_store %arg4[%c0_17, %c0_18, %c0_19], %32 {strides = array<i32>} : memref<1x8x128xf32, #tpu.memory_space<vmem>>, vector<1x8x128xf32>,
    } else {
    }
    %c0 = arith.constant 0 : index
    %c0_1 = arith.constant 0 : index
    %3 = vector.load %arg2[%c0, %c0_1] : memref<16x128xf32, #tpu.memory_space<vmem>>, vector<16x128xf32>
    %c0_2 = arith.constant 0 : index
    %c0_3 = arith.constant 0 : index
    %4 = vector.load %arg3[%c0_2, %c0_3] : memref<16x128xf32, #tpu.memory_space<vmem>>, vector<16x128xf32>
    %5 = arith.mulf %3, %4 : vector<16x128xf32>
    %cst = arith.constant dense<0.000000e+00> : vector<16xf32>
    %6 = vector.multi_reduction <add>, %5, %cst [1] : vector<16x128xf32> to vector<16xf32>
    %7 = vector.shape_cast %6 : vector<16xf32> to vector<16x1xf32>
    %8 = arith.mulf %3, %3 : vector<16x128xf32>
    %cst_4 = arith.constant dense<0.000000e+00> : vector<16xf32>
    %9 = vector.multi_reduction <add>, %8, %cst_4 [1] : vector<16x128xf32> to vector<16xf32>
    %10 = vector.shape_cast %9 : vector<16xf32> to vector<16x1xf32>
    %11 = arith.mulf %4, %4 : vector<16x128xf32>
    %cst_5 = arith.constant dense<0.000000e+00> : vector<16xf32>
    %12 = vector.multi_reduction <add>, %11, %cst_5 [1] : vector<16x128xf32> to vector<16xf32>
    %13 = vector.shape_cast %12 : vector<16xf32> to vector<16x1xf32>
    %cst_6 = arith.constant 1.000000e-16 : f32
    %14 = vector.broadcast %cst_6 : f32 to vector<16x1xf32>
    %15 = arith.maximumf %10, %14 : vector<16x1xf32>
    %cst_7 = arith.constant 1.000000e-16 : f32
    %16 = vector.broadcast %cst_7 : f32 to vector<16x1xf32>
    %17 = arith.maximumf %13, %16 : vector<16x1xf32>
    %18 = arith.mulf %15, %17 : vector<16x1xf32>
    %19 = math.rsqrt %18 : vector<16x1xf32>
    %20 = arith.mulf %7, %19 : vector<16x1xf32>
    %21 = math.absf %20 : vector<16x1xf32>
    %cst_8 = arith.constant 1.000000e+00 : f32
    %22 = vector.broadcast %cst_8 : f32 to vector<16x1xf32>
    %23 = arith.minimumf %21, %22 : vector<16x1xf32>
    %24 = vector.shape_cast %23 : vector<16x1xf32> to vector<1x16x1xf32>
    %cst_9 = arith.constant dense<0.000000e+00> : vector<1xf32>
    %25 = vector.multi_reduction <add>, %24, %cst_9 [1, 2] : vector<1x16x1xf32> to vector<1xf32>
    %26 = vector.shape_cast %25 : vector<1xf32> to vector<1x1x1xf32>
    %27 = vector.extract %26[0, 0, 0] : f32 from vector<1x1x1xf32>
    %c0_10 = arith.constant 0 : index
    %c0_11 = arith.constant 0 : index
    %c0_12 = arith.constant 0 : index
    %28 = vector.load %arg4[%c0_10, %c0_11, %c0_12] : memref<1x8x128xf32, #tpu.memory_space<vmem>>, vector<1x8x128xf32>
    %29 = vector.broadcast %27 : f32 to vector<1x8x128xf32>
    %30 = arith.addf %28, %29 : vector<1x8x128xf32>
    %c0_13 = arith.constant 0 : index
    %c0_14 = arith.constant 0 : index
    %c0_15 = arith.constant 0 : index
    %31 = vector.load %arg4[%c0_13, %c0_14, %c0_15] : memref<1x8x128xf32, #tpu.memory_space<vmem>>, vector<1x8x128xf32>
    tpu.vector_store %arg4[%c0_13, %c0_14, %c0_15], %30 {strides = array<i32>} : memref<1x8x128xf32, #tpu.memory_space<vmem>>, vector<1x8x128xf32>,
    return
  }
  func.func @transform_0(%arg0: i32, %arg1: i32) -> (i32, i32) {
    %c1_i32 = arith.constant 1 : i32
    %0 = arith.muli %arg0, %c1_i32 : i32
    %1 = arith.addi %0, %arg1 : i32
    %c0_i32 = arith.constant 0 : i32
    %c0_i32_0 = arith.constant 0 : i32
    return %1, %c0_i32 : i32, i32
  }
  func.func @transform_1(%arg0: i32, %arg1: i32) -> (i32, i32) {
    %c1_i32 = arith.constant 1 : i32
    %0 = arith.muli %arg0, %c1_i32 : i32
    %1 = arith.addi %0, %arg1 : i32
    %c0_i32 = arith.constant 0 : i32
    %c0_i32_0 = arith.constant 0 : i32
    return %1, %c0_i32 : i32, i32
  }
  func.func @transform_2(%arg0: i32, %arg1: i32) -> (i32, i32, i32) {
    %c0_i32 = arith.constant 0 : i32
    %c0_i32_0 = arith.constant 0 : i32
    %c0_i32_1 = arith.constant 0 : i32
    return %arg0, %c0_i32, %c0_i32_0 : i32, i32, i32
  }
}

</mosaic_0001>

<llo_original>
// kernel: tpu_custom_call.1
$region0: #{tpu_custom_call.1}
  #allocation0 [shape = 'u32[]', space=smem, size = 0x4, offset = 0x4, fixed_abs, tag = 'smem constant byte address 0x4 - core index']
  #allocation1 [shape = 'u32[144,128]{1,0:T(1,128)}', space=vmem, size = 0x12000, scoped, tag = 'internal scratch']
  %s0 = inlined_call_operand.hbm [shape: f32[16,128], index: 0, kind: input, shape index: {}]
  %s1 = inlined_call_operand.hbm [shape: f32[16,128], index: 1, kind: input, shape index: {}]
  %s2 = inlined_call_operand.hbm [shape: f32[1,8,128], index: 2, kind: output, shape index: {}]
  %s3 = sld [smem:[#allocation0]]
  $region30: #{tpu_custom_call.1} parent=0
    _
  %s5 = ssub.s32 1, %s3
  %s6 = scalar_select 0, %s5, %s3
  $region1: #{tpu_custom_call.1} parent=0
    #allocation2 [shape = 'u8[8192]{0}', space=vmem, size = 0x2000, scoped, tag = 'input window, operand 0, single buffered']
    #allocation3 [shape = 's32[1]{0}', space=sflag, size = 0x4, scoped, tag = 'scoped memory for tpu_custom_call.1']
    #allocation4 [shape = 's32[1]{0}', space=sflag, size = 0x4, scoped, tag = 'scoped memory for tpu_custom_call.1']
    #allocation5 [shape = 'u8[8192]{0}', space=vmem, size = 0x2000, scoped, tag = 'input window, operand 1, single buffered']
    #allocation6 [shape = 's32[1]{0}', space=sflag, size = 0x4, scoped, tag = 'scoped memory for tpu_custom_call.1']
    #allocation7 [shape = 'u8[4096]{0}', space=vmem, size = 0x1000, scoped, tag = 'output window, operand 0, single buffered']
    %7 = vsyncpa [#allocation3], 0
    %8 = vsyncpa [#allocation6], 0
    %9 = vsyncpa [#allocation4], 0
    // Predicated region
    $region2: #{tpu_custom_call.1} parent=1 // pred_check
      _
    $region3: #{tpu_custom_call.1} parent=1 // pred_check_branch
      %11 = sbr.rel (0) target = $region5
    $region4: #{tpu_custom_call.1} parent=1 // pred_region
      %s12 = sadd.s32 0, 0
      %s13 = smul.u32 2, %s12
      %s15 = ssub.s32 256, 256
      %16 = vsyncadd [#allocation3], %s15
      %s17 = smul.addr %s13, 128
      %s18 = scalar_lea.hbm %s0, %s17
      %s19 = sshll.u32 [#allocation2], 4
      %s20 = int_to_ptr.vmem [resolvable:$true] %s19
      %25 = dma.hbm_to_vmem [thread:$0]  %s18, 256, %s20, [#allocation3], 128, 128, 8
    $region5: #{tpu_custom_call.1} parent=1 // pred_fallthru
      _
    // Predicated region
    $region6: #{tpu_custom_call.1} parent=1 // pred_check
      _
    $region7: #{tpu_custom_call.1} parent=1 // pred_check_branch
      %27 = sbr.rel (0) target = $region9
    $region8: #{tpu_custom_call.1} parent=1 // pred_region
      %s28 = sadd.s32 0, 0
      %s29 = smul.u32 2, %s28
      %s31 = ssub.s32 256, 256
      %32 = vsyncadd [#allocation6], %s31
      %s33 = smul.addr %s29, 128
      %s34 = scalar_lea.hbm %s1, %s33
      %s35 = sshll.u32 [#allocation5], 4
      %s36 = int_to_ptr.vmem [resolvable:$true] %s35
      %41 = dma.hbm_to_vmem [thread:$0]  %s34, 256, %s36, [#allocation6], 128, 128, 8
    $region9: #{tpu_custom_call.1} parent=1 // pred_fallthru
      _
    // Predicated region
    $region10: #{tpu_custom_call.1} parent=1 // pred_check
      _
    $region11: #{tpu_custom_call.1} parent=1 // pred_check_branch
      %43 = sbr.rel (0) target = $region13
    $region12: #{tpu_custom_call.1} parent=1 // pred_region
      %44 = dma.done [#allocation3], 256
    $region13: #{tpu_custom_call.1} parent=1 // pred_fallthru
      _
    // Predicated region
    $region14: #{tpu_custom_call.1} parent=1 // pred_check
      _
    $region15: #{tpu_custom_call.1} parent=1 // pred_check_branch
      %46 = sbr.rel (0) target = $region17
    $region16: #{tpu_custom_call.1} parent=1 // pred_region
      %47 = dma.done [#allocation6], 256
    $region17: #{tpu_custom_call.1} parent=1 // pred_fallthru
      _
    %s48 = sadd.s32 0, 0
    %s49 = smul.u32 2, %s48
    %s50 = sadd.s32 0, 0
    %s51 = smul.u32 2, %s50
    %p52 = scmp.eq.s32.totalorder 0, 0
    // Predicated region
    $region18: #{tpu_custom_call.1} parent=1 // pred_check
      %p53 = pneg %p52
    $region19: #{tpu_custom_call.1} parent=1 // pred_check_branch
      %55 = sbr.rel (%p53) target = $region21
    $region20: #{tpu_custom_call.1} parent=1 // pred_region
      %56 = vst [vmem:[#allocation7] sm:$0xff] 0.0
    $region21: #{tpu_custom_call.1} parent=1 // pred_fallthru
      _
    %v57 = vld [vmem:[#allocation2] sm:$0xff]
    %v58 = vld [vmem:[#allocation2 + $0x8] sm:$0xff]
    %v59 = vld [vmem:[#allocation5] sm:$0xff]
    %v60 = vld [vmem:[#allocation5 + $0x8] sm:$0xff]
    %v61 = vmul.f32 %v57, %v59
    %v62 = vmul.f32 %v58, %v60
    %63 = vadd.xlane.f32.xlu0 %v61
    %v64 = vpop.xlane.xlu0 %63
    %65 = vadd.xlane.f32.xlu0 %v62
    %v66 = vpop.xlane.xlu0 %65
    %v67 = vmul.f32 %v57, %v57
    %v68 = vmul.f32 %v58, %v58
    %69 = vadd.xlane.f32.xlu0 %v67
    %v70 = vpop.xlane.xlu0 %69
    %71 = vadd.xlane.f32.xlu0 %v68
    %v72 = vpop.xlane.xlu0 %71
    %v73 = vmul.f32 %v59, %v59
    %v74 = vmul.f32 %v60, %v60
    %75 = vadd.xlane.f32.xlu0 %v73
    %v76 = vpop.xlane.xlu0 %75
    %77 = vadd.xlane.f32.xlu0 %v74
    %v78 = vpop.xlane.xlu0 %77
    %v79 = vmax.f32 %v70, 1e-16
    %v80 = vmax.f32 %v72, 1e-16
    %v81 = vmax.f32 %v76, 1e-16
    %v82 = vmax.f32 %v78, 1e-16
    %v83 = vmul.f32 %v79, %v81
    %v84 = vmul.f32 %v80, %v82
    %v85 = vrsqrt.pop %v83
    %v86 = vrsqrt.pop %v84
    %v87 = vmul.f32 %v64, %v85
    %v88 = vmul.f32 %v66, %v86
    %v89 = vand.u32 2147483647, %v87
    %v90 = vand.u32 2147483647, %v88
    %v91 = vmin.f32 %v89, 1.0
    %v92 = vmin.f32 %v90, 1.0
    %vm93 = vcmask 7168
    %v94 = vsel %vm93, %v91, 0.0
    %v95 = vsel %vm93, %v92, 0.0
    %v96 = vadd.f32 %v94, %v95
    %97 = vadd.xlane.f32.xlu0 %v96
    %v98 = vpop.xlane.xlu0 %97
    %v99 = vrot.slane %v98, 4
    %v100 = vadd.f32 %v98, %v99
    %v101 = vrot.slane %v100, 2
    %v102 = vadd.f32 %v100, %v101
    %v103 = vrot.slane %v102, 1
    %v104 = vadd.f32 %v102, %v103
    %s105 = vtos %v104
    %v106 = vld [vmem:[#allocation7] sm:$0xff]
    %v107 = vstv %s105
    %v108 = vadd.f32 %v106, %v107
    %109 = vst [vmem:[#allocation7] sm:$0xff] %v108
    // Predicated region
    $region22: #{tpu_custom_call.1} parent=1 // pred_check
      _
    $region23: #{tpu_custom_call.1} parent=1 // pred_check_branch
      %111 = sbr.rel (0) target = $region25
    $region24: #{tpu_custom_call.1} parent=1 // pred_region
      %s113 = ssub.s32 128, 128
      %114 = vsyncadd [#allocation4], %s113
      %s116 = sshll.u32 [#allocation7], 4
      %s117 = int_to_ptr.vmem [resolvable:$true] %s116
      %119 = dma.vmem_to_hbm [thread:$0]  %s117, 128, %s2, [#allocation4]
    $region25: #{tpu_custom_call.1} parent=1 // pred_fallthru
      _
    // Predicated region
    $region26: #{tpu_custom_call.1} parent=1 // pred_check
      _
    $region27: #{tpu_custom_call.1} parent=1 // pred_check_branch
      %121 = sbr.rel (0) target = $region29
    $region28: #{tpu_custom_call.1} parent=1 // pred_region
      %122 = dma.done [#allocation4], 128
    $region29: #{tpu_custom_call.1} parent=1 // pred_fallthru
      _
    %123 = vsyncpa [#allocation3], 1
    %124 = vsyncpa [#allocation6], 1
    %125 = vsyncpa [#allocation4], 1

</llo_original>
